<compile_context>
chip_gen: v6e
topology: v6e:2x2x1
jax: 0.10.0
libtpu: 0.0.40
codegen_flags: <defaults>
</compile_context>

<pallas_src>
import functools

import jax
import jax.numpy as jnp
from jax.experimental import pallas as pl
from jax.experimental.pallas import tpu as pltpu

LANE = 128


def _l2n_kernel(eps, x_ref, o_ref):
    # x_ref / o_ref: (C, St, 128) tile for one (spatial-tile, batch) grid step.
    x = x_ref[...]
    xf = x.astype(jnp.float32)
    # Sum of squares over channels: VPU accumulation across C (St, 128) vregs, in f32.
    sumsq = jnp.sum(xf * xf, axis=0, keepdims=True)           # (1, St, 128) f32
    # Exact 1/(norm + eps): matches x / (||x||_2 + eps) semantics of the module.
    inv = 1.0 / (jnp.sqrt(sumsq) + eps)                        # (1, St, 128) f32
    if x.dtype == jnp.float32:
        o_ref[...] = xf * inv
    else:
        # Keep the bulk scale in the native (narrow) dtype to limit vreg/VMEM pressure.
        o_ref[...] = (x * inv.astype(x.dtype)).astype(o_ref.dtype)


def l2n(x, eps=1e-6):
    """x: (N, C, H, W) -> (N, C, H, W), L2-normalized over the channel dim."""
    N, C, H, W = x.shape
    HW = H * W

    # Spatial axis in units of 128-lane rows; pad HW only up to the next multiple of 128
    # (at most 127 elements per (n, c) row, and a no-op when HW % 128 == 0).
    S = pl.cdiv(HW, LANE)
    HW_pad = S * LANE

    itemsize = jnp.dtype(x.dtype).itemsize
    # Sublane tile for this dtype: 8 (f32), 16 (bf16), 32 (int8 / fp8).
    sub = max(8, 32 // itemsize)

    # Per sublane-row VMEM cost of one grid step:
    #   2x double-buffered input blocks + 2x output blocks (native dtype)
    #   + one f32 working copy inside the kernel body.
    row_bytes = C * LANE * (4 * itemsize + 4)
    budget = 24 << 20          # total working-set target: fits v7x's 64 MiB physical VMEM
    block_cap = 4 << 20        # per native-dtype block
    st_cap = min(budget // row_bytes, block_cap // (C * LANE * itemsize), 1024)
    # Floor at one sublane tile; for extremely large C this may exceed the budget.
    # TODO(synk): for very large C (block > budget even at St=sub), split C into an
    # "arbitrary" reduction grid axis with a sumsq VMEM scratch + second scaling pass.
    st_cap = max(st_cap, sub)

    if S <= st_cap:
        St = S                               # full extent (allowed even if not % 8)
    else:
        St = max(sub, (st_cap // sub) * sub)  # large multiple-of-sublane tile

    # Explicit VMEM limit sized to the actual working set (+ headroom).
    block_bytes = C * St * LANE * itemsize
    temp_bytes = C * St * LANE * 4 + 4 * St * LANE * 4
    vmem_need = 4 * block_bytes + temp_bytes
    vmem_limit = int(min(max(32 << 20, vmem_need + (8 << 20)), 96 << 20))

    x3 = x.reshape(N, C, HW)
    if HW_pad != HW:
        # Tiny tail pad so the (..., S, 128) reshape is valid; padded columns have norm 0
        # -> output 0 (eps > 0) and are sliced off below.
        x3 = jnp.pad(x3, ((0, 0), (0, 0), (0, HW_pad - HW)))
    x4 = x3.reshape(N, C, S, LANE)

    block = (pl.Squeezed(), C, St, LANE)
    idx_map = lambda s, n: (n, 0, s, 0)

    out = pl.pallas_call(
        functools.partial(_l2n_kernel, float(eps)),
        out_shape=jax.ShapeDtypeStruct((N, C, S, LANE), x.dtype),
        grid_spec=pltpu.PrefetchScalarGridSpec(
            num_scalar_prefetch=0,
            grid=(pl.cdiv(S, St), N),   # long spatial axis first (v7x megacore sharding)
            in_specs=[pl.BlockSpec(block, idx_map)],
            out_specs=pl.BlockSpec(block, idx_map),
        ),
        compiler_params=pltpu.CompilerParams(
            dimension_semantics=("parallel", "parallel"),
            vmem_limit_bytes=vmem_limit,
        ),
    )(x4)

    out = out.reshape(N, C, HW_pad)
    if HW_pad != HW:
        out = out[:, :, :HW]
    return out.reshape(N, C, H, W)


def _ref_l2n(x, eps=1e-6):
    norm = jnp.sqrt(jnp.sum(x.astype(jnp.float32) ** 2, axis=1, keepdims=True))
    return (x.astype(jnp.float32) / (norm + eps)).astype(x.dtype)


if __name__ == "__main__":
    key = jax.random.PRNGKey(0)

    # Primary check: the module's natural small shape (HW = 256, no padding path).
    x = jax.random.normal(key, (2, 4, 16, 16), dtype=jnp.float32)
    y = l2n(x, eps=1e-6)
    jax.block_until_ready(y)
    assert jnp.allclose(y, _ref_l2n(x), atol=1e-5, rtol=1e-5), "mismatch vs reference"

    # Spatial size not a multiple of 128 (exercises the small tail-pad path).
    x_odd = jax.random.normal(jax.random.PRNGKey(1), (2, 4, 5, 7), dtype=jnp.float32)
    y_odd = l2n(x_odd, eps=1e-6)
    jax.block_until_ready(y_odd)
    assert jnp.allclose(y_odd, _ref_l2n(x_odd), atol=1e-5, rtol=1e-5), "mismatch (odd shape)"

    # Slightly larger aligned case (multiple sublane rows per tile, single full block).
    x_big = jax.random.normal(jax.random.PRNGKey(2), (2, 8, 32, 32), dtype=jnp.float32)
    y_big = l2n(x_big, eps=1e-6)
    jax.block_until_ready(y_big)
    assert jnp.allclose(y_big, _ref_l2n(x_big), atol=1e-5, rtol=1e-5), "mismatch (big shape)"

    print("KERNEL_OK")
</pallas_src>

<mosaic_0001>
module attributes {stable_mosaic.version = 11 : i64} {
  func.func @_l2n_kernel(%arg0: i32, %arg1: i32, %arg2: memref<1x4x2x128xf32, #tpu.memory_space<vmem>>, %arg3: memref<1x4x2x128xf32, #tpu.memory_space<vmem>>) attributes {dimension_semantics = [#tpu.dimension_semantics<parallel>, #tpu.dimension_semantics<parallel>], iteration_bounds = array<i64: 1, 2>, scalar_prefetch = 0 : i64, scratch_operands = 0 : i64, tpu.core_type = #tpu.core_type<tc>, window_params = [{transform_indices = @transform_0, window_bounds = array<i64: 1, 4, 2, 128>}, {transform_indices = @transform_1, window_bounds = array<i64: 1, 4, 2, 128>}]} {
    %c0 = arith.constant 0 : index
    %c0_0 = arith.constant 0 : index
    %c0_1 = arith.constant 0 : index
    %c0_2 = arith.constant 0 : index
    %0 = vector.load %arg2[%c0, %c0_0, %c0_1, %c0_2] : memref<1x4x2x128xf32, #tpu.memory_space<vmem>>, vector<1x4x2x128xf32>
    %1 = vector.shape_cast %0 : vector<1x4x2x128xf32> to vector<4x2x128xf32>
    %2 = arith.mulf %1, %1 : vector<4x2x128xf32>
    %cst = arith.constant dense<0.000000e+00> : vector<2x128xf32>
    %3 = vector.multi_reduction <add>, %2, %cst [0] : vector<4x2x128xf32> to vector<2x128xf32>
    %4 = vector.shape_cast %3 : vector<2x128xf32> to vector<1x2x128xf32>
    %5 = math.sqrt %4 : vector<1x2x128xf32>
    %cst_3 = arith.constant 9.99999997E-7 : f32
    %6 = vector.broadcast %cst_3 : f32 to vector<1x2x128xf32>
    %7 = arith.addf %5, %6 : vector<1x2x128xf32>
    %cst_4 = arith.constant 1.000000e+00 : f32
    %8 = vector.broadcast %cst_4 : f32 to vector<1x2x128xf32>
    %9 = arith.divf %8, %7 : vector<1x2x128xf32>
    %10 = vector.broadcast %9 : vector<1x2x128xf32> to vector<4x2x128xf32>
    %11 = arith.mulf %1, %10 : vector<4x2x128xf32>
    %c0_5 = arith.constant 0 : index
    %c0_6 = arith.constant 0 : index
    %c0_7 = arith.constant 0 : index
    %c0_8 = arith.constant 0 : index
    %12 = vector.load %arg3[%c0_5, %c0_6, %c0_7, %c0_8] : memref<1x4x2x128xf32, #tpu.memory_space<vmem>>, vector<1x4x2x128xf32>
    %13 = vector.shape_cast %12 : vector<1x4x2x128xf32> to vector<4x2x128xf32>
    %14 = vector.shape_cast %11 : vector<4x2x128xf32> to vector<1x4x2x128xf32>
    tpu.vector_store %arg3[%c0_5, %c0_6, %c0_7, %c0_8], %14 {strides = array<i32>} : memref<1x4x2x128xf32, #tpu.memory_space<vmem>>, vector<1x4x2x128xf32>,
    return
  }
  func.func @transform_0(%arg0: i32, %arg1: i32) -> (i32, i32, i32, i32) {
    %c0_i32 = arith.constant 0 : i32
    %c0_i32_0 = arith.constant 0 : i32
    %c0_i32_1 = arith.constant 0 : i32
    return %arg1, %c0_i32, %arg0, %c0_i32_0 : i32, i32, i32, i32
  }
  func.func @transform_1(%arg0: i32, %arg1: i32) -> (i32, i32, i32, i32) {
    %c0_i32 = arith.constant 0 : i32
    %c0_i32_0 = arith.constant 0 : i32
    %c0_i32_1 = arith.constant 0 : i32
    return %arg1, %c0_i32, %arg0, %c0_i32_0 : i32, i32, i32, i32
  }
}

</mosaic_0001>

<llo_original>
// kernel: tpu_custom_call.1
$region0: #{tpu_custom_call.1}
  #allocation0 [shape = 'u32[]', space=smem, size = 0x4, offset = 0x4, fixed_abs, tag = 'smem constant byte address 0x4 - core index']
  #allocation1 [shape = 'u32[144,128]{1,0:T(1,128)}', space=vmem, size = 0x12000, scoped, tag = 'internal scratch']
  %s0 = inlined_call_operand.hbm [shape: f32[2,4,2,128], index: 0, kind: input, shape index: {}]
  %s1 = inlined_call_operand.hbm [shape: f32[2,4,2,128], index: 1, kind: output, shape index: {}]
  %s2 = sld [smem:[#allocation0]]
  $region41: #{tpu_custom_call.1} parent=0
    _
  %s4 = ssub.s32 1, %s2
  %s5 = scalar_select 0, %s4, %s2
  $region1: #{tpu_custom_call.1} parent=0
    #allocation2 [shape = 'u8[8192]{0}', space=vmem, size = 0x2000, scoped, tag = 'input window, operand 0']
    #allocation3 [shape = 's32[2]{0}', space=sflag, size = 0x8, scoped, tag = 'scoped memory for tpu_custom_call.1']
    #allocation4 [shape = 's32[2]{0}', space=sflag, size = 0x8, scoped, tag = 'scoped memory for tpu_custom_call.1']
    #allocation5 [shape = 'u8[8192]{0}', space=vmem, size = 0x2000, scoped, tag = 'output window, operand 0']
    %6 = vsyncpa [#allocation3], 0
    %s7 = scalar_lea.sflag [#allocation3], 1
    %8 = vsyncpa %s7, 0
    %9 = vsyncpa [#allocation4], 0
    %s10 = scalar_lea.sflag [#allocation4], 1
    %11 = vsyncpa %s10, 0
    loop: start=0, step=1, limit=4
    $region2: #{tpu_custom_call.1} parent=1 // loop_pre_header
      _
    $region3: #{tpu_custom_call.1} parent=1 // loop_header
      %s13 = sphi 0, %s17
      %p14 = scmp.ge.s32.totalorder %s13, 4
      %s20 = sphi 0, %s32
      %s21 = sphi 0, %s28
      %s22 = sphi 0, %s20
      %s23 = sphi 0, %s21
      %s24 = sphi 0, %s22
      %s25 = sphi 0, %s23
      %s37 = sphi 0, %s39
      %s40 = sphi 0, %s37
      %s41 = sphi 0, %s40
      %s57 = sphi 0, %s41
      %s65 = sphi 0, %s67
      %s68 = sphi 0, %s65
      %s69 = sphi 0, %s68
      %s85 = sphi 0, %s69
    $region4: #{tpu_custom_call.1} parent=1 // loop_header_branch
      %16 = sbr.rel (%p14) target = $region8
    $region5: #{tpu_custom_call.1} parent=1 // loop_body
      %s18 = ssub.s32 %s13, 1
      %s19 = ssub.s32 %s13, 2
      %s26 = sadd.s32 1, %s21
      %p27 = scmp.ge.s32.totalorder %s26, 2
      %s28 = scalar_select %p27, 0, %s26
      %s29 = sadd.s32 1, %s20
      %s30 = scalar_select %p27, %s29, %s20
      %p31 = scmp.ge.s32.totalorder %s30, 1
      %s32 = scalar_select %p31, 0, %s30
      %s33 = ssub.s32 %s21, %s28
      %s34 = ssub.s32 %s20, %s32
      %s35 = sor.u32 %s33, %s34
      %p36 = scmp.eq.s32.totalorder %s35, 0
      %s38 = sadd.s32 %s37, 1
      %s39 = scalar_select %p36, %s37, %s38
      %p42 = pneg %p36
      %p43 = scmp.eq.s32.totalorder %s13, 1
      %p44 = por %p42, %p43
      %p45 = scmp.ne.s32.totalorder %s37, %s40
      %p46 = scmp.eq.s32.totalorder %s13, 0
      %p47 = por %p45, %p46
      %p48 = scmp.ne.s32.totalorder %s37, %s40
      %p49 = scmp.eq.s32.totalorder %s18, 1
      %p50 = por %p48, %p49
      %p51 = scmp.ne.s32.totalorder %s40, %s41
      %p52 = scmp.eq.s32.totalorder %s18, 0
      %p53 = por %p51, %p52
      %p54 = scmp.ne.s32.totalorder %s40, %s41
      %p55 = scmp.eq.s32.totalorder %s19, 1
      %p56 = por %p54, %p55
      %p58 = scmp.ne.s32.totalorder %s41, %s57
      %p59 = scmp.eq.s32.totalorder %s19, 0
      %p60 = por %p58, %p59
      %s61 = ssub.s32 %s21, %s28
      %s62 = ssub.s32 %s20, %s32
      %s63 = sor.u32 %s61, %s62
      %p64 = scmp.eq.s32.totalorder %s63, 0
      %s66 = sadd.s32 %s65, 1
      %s67 = scalar_select %p64, %s65, %s66
      %p70 = pneg %p64
      %p71 = scmp.eq.s32.totalorder %s13, 1
      %p72 = por %p70, %p71
      %p73 = scmp.ne.s32.totalorder %s65, %s68
      %p74 = scmp.eq.s32.totalorder %s13, 0
      %p75 = por %p73, %p74
      %p76 = scmp.ne.s32.totalorder %s65, %s68
      %p77 = scmp.eq.s32.totalorder %s18, 1
      %p78 = por %p76, %p77
      %p79 = scmp.ne.s32.totalorder %s68, %s69
      %p80 = scmp.eq.s32.totalorder %s18, 0
      %p81 = por %p79, %p80
      %p82 = scmp.ne.s32.totalorder %s68, %s69
      %p83 = scmp.eq.s32.totalorder %s19, 1
      %p84 = por %p82, %p83
      %p86 = scmp.ne.s32.totalorder %s69, %s85
      %p87 = scmp.eq.s32.totalorder %s19, 0
      %p88 = por %p86, %p87
      %p89 = scmp.le.s32.totalorder 1, %s13
      %p90 = scmp.lt.s32.totalorder %s13, 3
      %p91 = pnand %p89, %p90
      %p92 = pneg %p91
      // Predicated region
      $region9: #{tpu_custom_call.1} parent=5 // pred_check
        _
      $region10: #{tpu_custom_call.1} parent=5 // pred_check_branch
        %94 = sbr.rel (%p91) target = $region12
      $region11: #{tpu_custom_call.1} parent=5 // pred_region
        %s95 = ssub.s32 %s13, 1
      $region12: #{tpu_custom_call.1} parent=5 // pred_fallthru
        _
      %p96 = scmp.lt.s32.totalorder %s13, 2
      // Predicated region
      $region13: #{tpu_custom_call.1} parent=5 // pred_check
        %p97 = pneg %p96
      $region14: #{tpu_custom_call.1} parent=5 // pred_check_branch
        %99 = sbr.rel (%p97) target = $region16
      $region15: #{tpu_custom_call.1} parent=5 // pred_region
        // Predicated region
        $region17: #{tpu_custom_call.1} parent=15 // pred_check
          %p100 = pneg %p47
        $region18: #{tpu_custom_call.1} parent=15 // pred_check_branch
          %102 = sbr.rel (%p100) target = $region20
        $region19: #{tpu_custom_call.1} parent=15 // pred_region
          %s103 = sand.u32 %s37, 1
          %s104 = scalar_lea.sflag [#allocation3], %s103
          %s105 = sand.u32 %s37, 1
          %s106 = smul.addr %s105, 8
          %s107 = scalar_lea.vmem [#allocation2], %s106
          %s109 = ssub.s32 128, 128
          %110 = vsyncadd %s104, %s109
          %s111 = smul.addr %s21, 4
          %s112 = sadd.s32 %s20, %s111
          %s113 = smul.addr %s112, 32
          %s114 = scalar_lea.hbm %s0, %s113
          %s115 = sshll.u32 %s107, 4
          %s116 = int_to_ptr.vmem [resolvable:$true] %s115
          %121 = dma.hbm_to_vmem [thread:$0]  %s114, 128, %s116, %s104, 32, 32, 2
        $region20: #{tpu_custom_call.1} parent=15 // pred_fallthru
          _
      $region16: #{tpu_custom_call.1} parent=5 // pred_fallthru
        _
      %p122 = scmp.le.s32.totalorder 1, %s13
      %p123 = scmp.lt.s32.totalorder %s13, 3
      %p124 = pnand %p122, %p123
      %p125 = pneg %p124
      // Predicated region
      $region21: #{tpu_custom_call.1} parent=5 // pred_check
        _
      $region22: #{tpu_custom_call.1} parent=5 // pred_check_branch
        %127 = sbr.rel (%p124) target = $region24
      $region23: #{tpu_custom_call.1} parent=5 // pred_region
        %s128 = ssub.s32 %s13, 1
        %s129 = sand.u32 %s40, 1
        %s130 = scalar_lea.sflag [#allocation3], %s129
        %s131 = sand.u32 %s40, 1
        %s132 = smul.addr %s131, 8
        %s133 = scalar_lea.vmem [#allocation2], %s132
        // Predicated region
        $region25: #{tpu_custom_call.1} parent=23 // pred_check
          %p134 = pneg %p53
        $region26: #{tpu_custom_call.1} parent=23 // pred_check_branch
          %136 = sbr.rel (%p134) target = $region28
        $region27: #{tpu_custom_call.1} parent=23 // pred_region
          %137 = dma.done %s130, 128
        $region28: #{tpu_custom_call.1} parent=23 // pred_fallthru
          _
        %s138 = sand.u32 %s40, 1
        %s139 = scalar_lea.sflag [#allocation3], %s138
        %s140 = sand.u32 %s40, 1
        %s141 = smul.addr %s140, 8
        %s142 = scalar_lea.vmem [#allocation2], %s141
        %p143 = pneg %p53
        %p144 = pneg %p50
        %p145 = pneg %p81
        %p146 = pneg %p78
        %s147 = sand.u32 %s68, 1
        %s148 = scalar_lea.sflag [#allocation4], %s147
        %s149 = sand.u32 %s68, 1
        %s150 = smul.addr %s149, 8
        %s151 = scalar_lea.vmem [#allocation5], %s150
        %v152 = vld [vmem:[%s133] sm:$0x3]
        %v153 = vld [vmem:[%s133 + $0x2] sm:$0x3]
        %v154 = vld [vmem:[%s133 + $0x4] sm:$0x3]
        %v155 = vld [vmem:[%s133 + $0x6] sm:$0x3]
        %v156 = vmul.f32 %v152, %v152
        %v157 = vmul.f32 %v153, %v153
        %v158 = vmul.f32 %v154, %v154
        %v159 = vmul.f32 %v155, %v155
        %vm160 = vcmask 1041408
        %v161 = vsel %vm160, %v156, 0.0
        %v162 = vsel %vm160, %v157, 0.0
        %v163 = vadd.f32 %v161, %v162
        %v164 = vsel %vm160, %v158, 0.0
        %v165 = vadd.f32 %v163, %v164
        %v166 = vsel %vm160, %v159, 0.0
        %v167 = vadd.f32 %v165, %v166
        %v168 = vrsqrt.pop %v167
        %v169 = vmul.f32 %v167, %v168
        %vm170 = vcmp.eq.f32.partialorder %v167, inf
        %v171 = vsel %vm170, %v167, %v169
        %vm172 = vcmp.eq.f32.partialorder %v167, 0.0
        %v173 = vand.u32 %v167, 2147483648
        %v174 = vsel %vm172, %v173, %v171
        %v175 = vadd.f32 %v174, 1e-06
        %v176 = vrcp.pop %v175
        %v177 = vmul.f32 1.0, %v176
        %v178 = vmul.f32 %v152, %v177
        %v179 = vmul.f32 %v153, %v177
        %v180 = vmul.f32 %v154, %v177
        %v181 = vmul.f32 %v155, %v177
        %182 = vst [vmem:[%s151] sm:$0x3] %v178
        %183 = vst [vmem:[%s151 + $0x2] sm:$0x3] %v179
        %184 = vst [vmem:[%s151 + $0x4] sm:$0x3] %v180
        %185 = vst [vmem:[%s151 + $0x6] sm:$0x3] %v181
        %s186 = sand.u32 %s68, 1
        %s187 = scalar_lea.sflag [#allocation4], %s186
        %s188 = sand.u32 %s68, 1
        %s189 = smul.addr %s188, 8
        %s190 = scalar_lea.vmem [#allocation5], %s189
        // Predicated region
        $region29: #{tpu_custom_call.1} parent=23 // pred_check
          %p191 = pneg %p78
        $region30: #{tpu_custom_call.1} parent=23 // pred_check_branch
          %193 = sbr.rel (%p191) target = $region32
        $region31: #{tpu_custom_call.1} parent=23 // pred_region
          %s195 = ssub.s32 128, 128
          %196 = vsyncadd %s187, %s195
          %s197 = smul.addr %s23, 4
          %s198 = sadd.s32 %s22, %s197
          %s199 = smul.addr %s198, 32
          %s200 = scalar_lea.hbm %s1, %s199
          %s201 = sshll.u32 %s190, 4
          %s202 = int_to_ptr.vmem [resolvable:$true] %s201
          %207 = dma.vmem_to_hbm [thread:$0]  %s202, 128, %s200, %s187, 32, 32, 2
        $region32: #{tpu_custom_call.1} parent=23 // pred_fallthru
          _
      $region24: #{tpu_custom_call.1} parent=5 // pred_fallthru
        _
      %p208 = scmp.le.s32.totalorder 2, %s13
      // Predicated region
      $region33: #{tpu_custom_call.1} parent=5 // pred_check
        %p209 = pneg %p208
      $region34: #{tpu_custom_call.1} parent=5 // pred_check_branch
        %211 = sbr.rel (%p209) target = $region36
      $region35: #{tpu_custom_call.1} parent=5 // pred_region
        %s212 = ssub.s32 %s13, 2
        // Predicated region
        $region37: #{tpu_custom_call.1} parent=35 // pred_check
          %p213 = pneg %p84
        $region38: #{tpu_custom_call.1} parent=35 // pred_check_branch
          %215 = sbr.rel (%p213) target = $region40
        $region39: #{tpu_custom_call.1} parent=35 // pred_region
          %s216 = sand.u32 %s69, 1
          %s217 = scalar_lea.sflag [#allocation4], %s216
          %s218 = sand.u32 %s69, 1
          %s219 = smul.addr %s218, 8
          %s220 = scalar_lea.vmem [#allocation5], %s219
          %221 = dma.done %s217, 128
        $region40: #{tpu_custom_call.1} parent=35 // pred_fallthru
          _
      $region36: #{tpu_custom_call.1} parent=5 // pred_fallthru
        _
    $region6: #{tpu_custom_call.1} parent=1 // loop_footer
      %s17 = sadd.s32 1, %s13
    $region7: #{tpu_custom_call.1} parent=1 // loop_footer_branch
      %12 = sbr.rel target = $region3
    $region8: #{tpu_custom_call.1} parent=1 // loop_exit
      _
    %222 = vsyncpa [#allocation3], 1
    %s223 = scalar_lea.sflag [#allocation3], 1
    %224 = vsyncpa %s223, 1
    %225 = vsyncpa [#allocation4], 1
    %s226 = scalar_lea.sflag [#allocation4], 1
    %227 = vsyncpa %s226, 1

</llo_original>
